<compile_context>
chip_gen: v5e
topology: v5e:2x2
jax: 0.10.0
libtpu: 0.0.40
codegen_flags: <defaults>
</compile_context>

<pallas_src>
import jax
import jax.numpy as jnp
from jax.experimental import pallas as pl
from jax.experimental.pallas import tpu as pltpu


def _silu(x):
    return x * jax.nn.sigmoid(x)


def time_embed_kernel(x_ref, w1_ref, w2_ref, bias_ref, out_ref):
    """Fused Linear -> SiLU -> Linear.

    x_ref:    (B, Cin)   input
    w1_ref:   (Cin, H)   first Linear weight, already transposed to (in, out)
    w2_ref:   (H, H)     second Linear weight, already transposed to (in, out)
    bias_ref: (2, H)     row 0 = b1, row 1 = b2 (packed into one block)
    out_ref:  (B, H)
    """
    x = x_ref[...].astype(jnp.float32)
    b = bias_ref[...].astype(jnp.float32)

    h = jnp.dot(x, w1_ref[...], preferred_element_type=jnp.float32) + b[0:1, :]
    h = _silu(h)
    y = jnp.dot(h, w2_ref[...], preferred_element_type=jnp.float32) + b[1:2, :]

    out_ref[...] = y.astype(out_ref.dtype)


def time_embed_layer(x, params):
    """x: (B, base_channels) -> (B, time_embed_channels)."""
    B = x.shape[0]
    H = params["w1"].shape[1]
    bias = jnp.stack([params["b1"], params["b2"]], axis=0)   # (2, H) packed

    vmem = pl.BlockSpec(memory_space=pltpu.MemorySpace.VMEM)
    return pl.pallas_call(
        time_embed_kernel,
        out_shape=jax.ShapeDtypeStruct((B, H), x.dtype),
        in_specs=[vmem, vmem, vmem, vmem],
        out_specs=vmem,
    )(x, params["w1"], params["w2"], bias)


# --------------------------- pure-JAX reference ----------------------------- #
def reference(x, params):
    h = _silu(x @ params["w1"] + params["b1"])
    return h @ params["w2"] + params["b2"]


# ----------------------------------- main ----------------------------------- #
if __name__ == "__main__":
    # batch=2, base_channels=32, time_embed_channels=128 (lane-dense hidden dim)
    B, C_IN, C_EMB = 2, 32, 128

    key = jax.random.PRNGKey(0)
    ks = jax.random.split(key, 5)
    x = jax.random.normal(ks[0], (B, C_IN), jnp.float32)

    # nn.Linear stores weight as (out, in) and computes x @ W.T + b; we
    # pre-transpose to (in, out) on the host so the kernel does plain matmuls.
    params = {
        "w1": 0.1 * jax.random.normal(ks[1], (C_IN, C_EMB), jnp.float32),
        "b1": 0.1 * jax.random.normal(ks[2], (C_EMB,), jnp.float32),
        "w2": 0.1 * jax.random.normal(ks[3], (C_EMB, C_EMB), jnp.float32),
        "b2": 0.1 * jax.random.normal(ks[4], (C_EMB,), jnp.float32),
    }
    # TODO(synk): reset_parameters()/apply_initialization is host-side weight
    # init only; forward semantics are parameter-independent, so deterministic
    # random parameters are used here.

    out = jax.block_until_ready(time_embed_layer(x, params))
    ref = jax.block_until_ready(reference(x, params))

    assert out.shape == (B, C_EMB)
    assert jnp.allclose(out, ref, atol=2e-3, rtol=2e-3), (
        float(jnp.max(jnp.abs(out - ref))))

    print("KERNEL_OK")
</pallas_src>

<mosaic_0001>
module attributes {stable_mosaic.version = 11 : i64} {
  func.func @time_embed_kernel(%arg0: memref<2x32xf32, #tpu.memory_space<vmem>>, %arg1: memref<32x128xf32, #tpu.memory_space<vmem>>, %arg2: memref<128x128xf32, #tpu.memory_space<vmem>>, %arg3: memref<2x128xf32, #tpu.memory_space<vmem>>, %arg4: memref<2x128xf32, #tpu.memory_space<vmem>>) attributes {dimension_semantics = [], scalar_prefetch = 0 : i64, scratch_operands = 0 : i64, tpu.core_type = #tpu.core_type<tc>} {
    %c0 = arith.constant 0 : index
    %c0_0 = arith.constant 0 : index
    %0 = vector.load %arg0[%c0, %c0_0] : memref<2x32xf32, #tpu.memory_space<vmem>>, vector<2x32xf32>
    %c0_1 = arith.constant 0 : index
    %c0_2 = arith.constant 0 : index
    %1 = vector.load %arg3[%c0_1, %c0_2] : memref<2x128xf32, #tpu.memory_space<vmem>>, vector<2x128xf32>
    %c0_3 = arith.constant 0 : index
    %c0_4 = arith.constant 0 : index
    %2 = vector.load %arg1[%c0_3, %c0_4] : memref<32x128xf32, #tpu.memory_space<vmem>>, vector<32x128xf32>
    %cst = arith.constant dense<0.000000e+00> : vector<2x128xf32>
    %3 = tpu.matmul %0, %2, %cst {dimension_numbers = #tpu.dot_dimension_numbers<[1], [0], [0], [1], [0, 0, 1, 1], [], []>} : vector<2x32xf32>, vector<32x128xf32>, vector<2x128xf32> -> vector<2x128xf32>
    %4 = vector.extract_strided_slice %1 {offsets = [0, 0], sizes = [1, 128], strides = [1, 1]} : vector<2x128xf32> to vector<1x128xf32>
    %5 = vector.broadcast %4 : vector<1x128xf32> to vector<2x128xf32>
    %6 = arith.addf %3, %5 : vector<2x128xf32>
    %7 = arith.negf %6 : vector<2x128xf32>
    %8 = math.exp %7 : vector<2x128xf32>
    %cst_5 = arith.constant 1.000000e+00 : f32
    %9 = vector.broadcast %cst_5 : f32 to vector<2x128xf32>
    %10 = arith.addf %9, %8 : vector<2x128xf32>
    %11 = arith.divf %9, %10 : vector<2x128xf32>
    %12 = arith.mulf %6, %11 : vector<2x128xf32>
    %c0_6 = arith.constant 0 : index
    %c0_7 = arith.constant 0 : index
    %13 = vector.load %arg2[%c0_6, %c0_7] : memref<128x128xf32, #tpu.memory_space<vmem>>, vector<128x128xf32>
    %cst_8 = arith.constant dense<0.000000e+00> : vector<2x128xf32>
    %14 = tpu.matmul %12, %13, %cst_8 {dimension_numbers = #tpu.dot_dimension_numbers<[1], [0], [0], [1], [0, 0, 1, 1], [], []>} : vector<2x128xf32>, vector<128x128xf32>, vector<2x128xf32> -> vector<2x128xf32>
    %15 = vector.extract_strided_slice %1 {offsets = [1, 0], sizes = [1, 128], strides = [1, 1]} : vector<2x128xf32> to vector<1x128xf32>
    %16 = vector.broadcast %15 : vector<1x128xf32> to vector<2x128xf32>
    %17 = arith.addf %14, %16 : vector<2x128xf32>
    %c0_9 = arith.constant 0 : index
    %c0_10 = arith.constant 0 : index
    %18 = vector.load %arg4[%c0_9, %c0_10] : memref<2x128xf32, #tpu.memory_space<vmem>>, vector<2x128xf32>
    tpu.vector_store %arg4[%c0_9, %c0_10], %17 {strides = array<i32>} : memref<2x128xf32, #tpu.memory_space<vmem>>, vector<2x128xf32>,
    return
  }
}

</mosaic_0001>

<llo_original>
// kernel: tpu_custom_call.1
$region0: #{tpu_custom_call.1}
  #allocation0 [shape = 'u32[]', space=smem, size = 0x4, offset = 0x4, fixed_abs, tag = 'smem constant byte address 0x4 - core index']
  #allocation1 [shape = 'u32[72,128]{1,0:T(1,128)}', space=vmem, size = 0x9000, scoped, tag = 'internal scratch']
  %s0 = inlined_call_operand.hbm [shape: f32[2,32], index: 0, kind: input, shape index: {}]
  %s1 = inlined_call_operand.hbm [shape: f32[32,128], index: 1, kind: input, shape index: {}]
  %s2 = inlined_call_operand.hbm [shape: f32[128,128], index: 2, kind: input, shape index: {}]
  %s3 = inlined_call_operand.vmem [shape: f32[2,128], index: 3, kind: input, shape index: {}]
  %s4 = inlined_call_operand.hbm [shape: f32[2,128], index: 4, kind: output, shape index: {}]
  %s5 = sld [smem:[#allocation0]]
  $region38: #{tpu_custom_call.1} parent=0
    _
  %s7 = ssub.s32 1, %s5
  %s8 = scalar_select 0, %s7, %s5
  $region1: #{tpu_custom_call.1} parent=0
    #allocation2 [shape = 'u8[1024]{0}', space=vmem, size = 0x400, scoped, tag = 'input window, operand 0, single buffered']
    #allocation3 [shape = 's32[1]{0}', space=sflag, size = 0x4, scoped, tag = 'scoped memory for tpu_custom_call.1']
    #allocation4 [shape = 's32[1]{0}', space=sflag, size = 0x4, scoped, tag = 'scoped memory for tpu_custom_call.1']
    #allocation5 [shape = 'u8[16384]{0}', space=vmem, size = 0x4000, scoped, tag = 'input window, operand 1, single buffered']
    #allocation6 [shape = 's32[1]{0}', space=sflag, size = 0x4, scoped, tag = 'scoped memory for tpu_custom_call.1']
    #allocation7 [shape = 'u8[65536]{0}', space=vmem, size = 0x10000, scoped, tag = 'input window, operand 2, single buffered']
    #allocation8 [shape = 'u8[1024]{0}', space=vmem, size = 0x400, scoped, tag = 'output window, operand 0, single buffered']
    %9 = vsyncpa [#allocation3], 0
    %10 = vsyncpa [#allocation6], 0
    %11 = vsyncpa [#allocation4], 0
    // Predicated region
    $region2: #{tpu_custom_call.1} parent=1 // pred_check
      _
    $region3: #{tpu_custom_call.1} parent=1 // pred_check_branch
      %13 = sbr.rel (0) target = $region5
    $region4: #{tpu_custom_call.1} parent=1 // pred_region
      %15 = vsyncadd [#allocation3], 0
      %s17 = sshll.u32 %s0, 4
      %s18 = int_to_ptr.hbm [resolvable:$true] %s17
      %s19 = sshll.u32 [#allocation2], 4
      %s20 = int_to_ptr.vmem [resolvable:$true] %s19
      %22 = dma.hbm_to_vmem [thread:$0]  %s18, 32, %s20, [#allocation3]
    $region5: #{tpu_custom_call.1} parent=1 // pred_fallthru
      _
    // Predicated region
    $region6: #{tpu_custom_call.1} parent=1 // pred_check
      _
    $region7: #{tpu_custom_call.1} parent=1 // pred_check_branch
      %24 = sbr.rel (0) target = $region9
    $region8: #{tpu_custom_call.1} parent=1 // pred_region
      %26 = vsyncadd [#allocation6], 0
      %s27 = sshll.u32 %s1, 4
      %s28 = int_to_ptr.hbm [resolvable:$true] %s27
      %s29 = sshll.u32 [#allocation5], 4
      %s30 = int_to_ptr.vmem [resolvable:$true] %s29
      %35 = dma.hbm_to_vmem [thread:$0]  %s28, 512, %s30, [#allocation6], 128, 128, 8
    $region9: #{tpu_custom_call.1} parent=1 // pred_fallthru
      _
    // Predicated region
    $region10: #{tpu_custom_call.1} parent=1 // pred_check
      _
    $region11: #{tpu_custom_call.1} parent=1 // pred_check_branch
      %37 = sbr.rel (0) target = $region13
    $region12: #{tpu_custom_call.1} parent=1 // pred_region
      %39 = vsyncadd [#allocation6], 0
      %s40 = sshll.u32 %s2, 4
      %s41 = int_to_ptr.hbm [resolvable:$true] %s40
      %s42 = sshll.u32 [#allocation7], 4
      %s43 = int_to_ptr.vmem [resolvable:$true] %s42
      %48 = dma.hbm_to_vmem [thread:$0]  %s41, 2048, %s43, [#allocation6], 128, 128, 8
    $region13: #{tpu_custom_call.1} parent=1 // pred_fallthru
      _
    // Predicated region
    $region14: #{tpu_custom_call.1} parent=1 // pred_check
      _
    $region15: #{tpu_custom_call.1} parent=1 // pred_check_branch
      %50 = sbr.rel (0) target = $region17
    $region16: #{tpu_custom_call.1} parent=1 // pred_region
      _
    $region17: #{tpu_custom_call.1} parent=1 // pred_fallthru
      _
    // Predicated region
    $region18: #{tpu_custom_call.1} parent=1 // pred_check
      _
    $region19: #{tpu_custom_call.1} parent=1 // pred_check_branch
      %52 = sbr.rel (0) target = $region21
    $region20: #{tpu_custom_call.1} parent=1 // pred_region
      %54 = dma.done [#allocation3], 32
    $region21: #{tpu_custom_call.1} parent=1 // pred_fallthru
      _
    // Predicated region
    $region22: #{tpu_custom_call.1} parent=1 // pred_check
      _
    $region23: #{tpu_custom_call.1} parent=1 // pred_check_branch
      %56 = sbr.rel (0) target = $region25
    $region24: #{tpu_custom_call.1} parent=1 // pred_region
      %58 = dma.done [#allocation6], 512
    $region25: #{tpu_custom_call.1} parent=1 // pred_fallthru
      _
    // Predicated region
    $region26: #{tpu_custom_call.1} parent=1 // pred_check
      _
    $region27: #{tpu_custom_call.1} parent=1 // pred_check_branch
      %60 = sbr.rel (0) target = $region29
    $region28: #{tpu_custom_call.1} parent=1 // pred_region
      %62 = dma.done [#allocation6], 2048
    $region29: #{tpu_custom_call.1} parent=1 // pred_fallthru
      _
    %v63 = vld [vmem:[#allocation2] sm:$0x3]
    %v64 = vld [vmem:[%s3] sm:$0x3]
    %v65 = vld [vmem:[#allocation5] sm:$0xff]
    %v66 = vld [vmem:[#allocation5 + $0x8] sm:$0xff]
    %v67 = vld [vmem:[#allocation5 + $0x10] sm:$0xff]
    %v68 = vld [vmem:[#allocation5 + $0x18] sm:$0xff]
    %v69 = vperm.slane %v64, 0
    %vm70 = vcmask 261120
    %v72 = vsel %vm70, %v63, 0
    %74 = vmatpush.msra.mxu0 0.0
    %75 = vmatpush.msra.mxu0 0.0
    %76 = vmatpush.msra.mxu0 0.0
    %77 = vmatpush.msra.mxu0 0.0
    %78 = vmatpush.msra.mxu0 0.0
    %79 = vmatpush.msra.mxu0 0.0
    %80 = vmatpush.msra.mxu0 0.0
    %81 = vmatpush.msra.mxu0 0.0
    %82 = vmatpush.msra.mxu0 0.0
    %83 = vmatpush.msra.mxu0 0.0
    %84 = vmatpush.msra.mxu0 0.0
    %85 = vmatpush.msra.mxu0 0.0
    %86 = vmatpush.msra.mxu0 %v68
    %87 = vmatpush.msra.mxu0 %v67
    %88 = vmatpush.msra.mxu0 %v66
    %89 = vmatpush.msra.mxu0 %v65
    %90 = vmatmul.f32.gmra.mxu0 %v72
    %v91 = vpop.f32.mrf.mxu0
    %v92 = vadd.f32 %v69, %v91
    %93 = vdwg.mxu0
    %v94 = vxor.u32 %v92, 2147483648
    %v95 = vmul.f32 %v94, 1.442695
    %v96 = vpow.pop %v95
    %v97 = vadd.f32 %v96, 1.0
    %v98 = vrcp.pop %v97
    %v99 = vmul.f32 %v97, %v98
    %v100 = vsub.f32 1.0, %v99
    %v101 = vmul.f32 %v98, %v100
    %v102 = vadd.f32 %v98, %v101
    %vm103 = vweird.f32 %v97
    %vm104 = vweird.f32 %v98
    %vm105 = vmor %vm103, %vm104
    %v106 = vsel %vm105, %v98, %v102
    %v107 = vand.u32 2147483647, %v97
    %vm108 = vcmp.eq.f32.partialorder %v107, 8.507059e+37
    %v109 = vand.u32 %v97, 2147483648
    %v110 = vor.u32 1.1754944e-38, %v109
    %v111 = vsel %vm108, %v110, %v106
    %v112 = vmul.f32 1.0, %v111
    %v113 = vmul.f32 %v92, %v112
    %v114 = vld [vmem:[#allocation7] sm:$0xff]
    %v115 = vld [vmem:[#allocation7 + $0x8] sm:$0xff]
    %v116 = vld [vmem:[#allocation7 + $0x10] sm:$0xff]
    %v117 = vld [vmem:[#allocation7 + $0x18] sm:$0xff]
    %v118 = vld [vmem:[#allocation7 + $0x20] sm:$0xff]
    %v119 = vld [vmem:[#allocation7 + $0x28] sm:$0xff]
    %v120 = vld [vmem:[#allocation7 + $0x30] sm:$0xff]
    %v121 = vld [vmem:[#allocation7 + $0x38] sm:$0xff]
    %v122 = vld [vmem:[#allocation7 + $0x40] sm:$0xff]
    %v123 = vld [vmem:[#allocation7 + $0x48] sm:$0xff]
    %v124 = vld [vmem:[#allocation7 + $0x50] sm:$0xff]
    %v125 = vld [vmem:[#allocation7 + $0x58] sm:$0xff]
    %v126 = vld [vmem:[#allocation7 + $0x60] sm:$0xff]
    %v127 = vld [vmem:[#allocation7 + $0x68] sm:$0xff]
    %v128 = vld [vmem:[#allocation7 + $0x70] sm:$0xff]
    %v129 = vld [vmem:[#allocation7 + $0x78] sm:$0xff]
    %v130 = vperm.slane %v64, 1
    %131 = vmatpush.msra.mxu0 %v129
    %132 = vmatpush.msra.mxu0 %v128
    %133 = vmatpush.msra.mxu0 %v127
    %134 = vmatpush.msra.mxu0 %v126
    %135 = vmatpush.msra.mxu0 %v125
    %136 = vmatpush.msra.mxu0 %v124
    %137 = vmatpush.msra.mxu0 %v123
    %138 = vmatpush.msra.mxu0 %v122
    %139 = vmatpush.msra.mxu0 %v121
    %140 = vmatpush.msra.mxu0 %v120
    %141 = vmatpush.msra.mxu0 %v119
    %142 = vmatpush.msra.mxu0 %v118
    %143 = vmatpush.msra.mxu0 %v117
    %144 = vmatpush.msra.mxu0 %v116
    %145 = vmatpush.msra.mxu0 %v115
    %146 = vmatpush.msra.mxu0 %v114
    %147 = vmatmul.f32.gmra.mxu0 %v113
    %v148 = vpop.f32.mrf.mxu0
    %v149 = vadd.f32 %v130, %v148
    %150 = vdwg.mxu0
    %151 = vst [vmem:[#allocation8] sm:$0x3] %v149
    // Predicated region
    $region30: #{tpu_custom_call.1} parent=1 // pred_check
      _
    $region31: #{tpu_custom_call.1} parent=1 // pred_check_branch
      %153 = sbr.rel (0) target = $region33
    $region32: #{tpu_custom_call.1} parent=1 // pred_region
      %155 = vsyncadd [#allocation4], 0
      %s157 = sshll.u32 [#allocation8], 4
      %s158 = int_to_ptr.vmem [resolvable:$true] %s157
      %s159 = sshll.u32 %s4, 4
      %s160 = int_to_ptr.hbm [resolvable:$true] %s159
      %162 = dma.vmem_to_hbm [thread:$0]  %s158, 32, %s160, [#allocation4]
    $region33: #{tpu_custom_call.1} parent=1 // pred_fallthru
      _
    // Predicated region
    $region34: #{tpu_custom_call.1} parent=1 // pred_check
      _
    $region35: #{tpu_custom_call.1} parent=1 // pred_check_branch
      %164 = sbr.rel (0) target = $region37
    $region36: #{tpu_custom_call.1} parent=1 // pred_region
      %166 = dma.done [#allocation4], 32
    $region37: #{tpu_custom_call.1} parent=1 // pred_fallthru
      _
    %167 = vsyncpa [#allocation3], 1
    %168 = vsyncpa [#allocation6], 1
    %169 = vsyncpa [#allocation4], 1

</llo_original>
